<compile_context>
chip_gen: v7x
topology: tpu7x:2x2x1
jax: 0.10.0
libtpu: 0.0.40
codegen_flags: <defaults>
</compile_context>

<pallas_src>
import numpy as np
import jax
import jax.numpy as jnp
from jax import lax
from jax.experimental import pallas as pl
from jax.experimental.pallas import tpu as pltpu


# ----------------------------------------------------------------------------
# Kernels
# ----------------------------------------------------------------------------
def _sd_row_kernel(x_ref, noise_ref, o_ref):
    # x_ref: (tile_n, tile_f) input tile; noise_ref: (tile_n, 1) per-row f32
    # scale (0.0 for dropped rows, 1/survival otherwise).  Multiply happens in
    # f32 (noise stays f32 for any x dtype) and the product is cast back, so
    # bf16 inputs see the exact 1/(1-p) scale; the cast is free VPU filler.
    o_ref[...] = (x_ref[...] * noise_ref[...]).astype(o_ref.dtype)


def _make_sd_scale_kernel(scale: float):
    # Batch mode: a single static scale for the whole tensor, baked in as a
    # scalar constant (no SMEM operand needed).
    def kernel(x_ref, o_ref):
        o_ref[...] = (x_ref[...] * jnp.float32(scale)).astype(o_ref.dtype)
    return kernel


# ----------------------------------------------------------------------------
# Tile / VMEM budgeting
# ----------------------------------------------------------------------------
def _round_down(x: int, m: int) -> int:
    return (x // m) * m


def _round_up(x: int, m: int) -> int:
    return ((x + m - 1) // m) * m


def _vmem_limit_bytes() -> int:
    """Scoped-VMEM request: half the physical capacity, capped at 64 MiB.

    If the hardware query fails we fall back to the *smallest* per-TC VMEM of
    the supported generations (v7x: 64 MiB), so the request (32 MiB) never
    equals the whole physical capacity and leaves scratch headroom.
    """
    cap = 0
    try:
        info = pltpu.get_tpu_info()
        cap = int(getattr(info, "vmem_capacity_bytes", 0) or 0)
    except Exception:
        cap = 0
    if cap <= 0:
        cap = 64 << 20
    return int(min(cap // 2, 64 << 20))


def _choose_row_tiles(N: int, F: int, itemsize: int, per_buffer_bytes: int):
    """Pick (tile_n, tile_f) for the (N, F) row-mode layout.

    tile_f: lane-dense (multiple of 128, or the full F); kept as wide as
            possible so stores are unmasked full-lane vst.
    tile_n: multiple of 8 (sublane) or full N; grown with NO artificial cap so
            the block actually fills ~per_buffer_bytes (roofline knee).
    """
    max_elems = max(per_buffer_bytes // itemsize, 8 * 128)
    rows_unit = N if N <= 8 else 8

    if F <= 128 or F * rows_unit <= max_elems:
        tile_f = F                          # whole feature axis in one block
    else:
        budget_f = max(max_elems // rows_unit, 128)
        tile_f = max(min(_round_down(budget_f, 128), _round_down(F, 128)), 128)

    if N <= 8:
        tile_n = N
    else:
        budget_n = max(max_elems // max(tile_f, 1), 8)
        tile_n = max(min(_round_down(budget_n, 8), _round_down(N, 8)), 8)
    return tile_n, tile_f


def _choose_slab_rows(R: int, W: int, itemsize: int, per_buffer_bytes: int):
    """Row-tile for the lane-dense (R, W) batch-mode slab (full-W blocks)."""
    max_elems = max(per_buffer_bytes // itemsize, 8 * 128)
    if R <= 8:
        return R
    budget_r = max(max_elems // max(W, 1), 8)
    return max(min(_round_down(budget_r, 8), _round_down(R, 8)), 8)


def _split_rows_for_megacore(dim: int, tile: int) -> int:
    """Force >= 2 row blocks so both v7x TensorCores get work.

    Only called when the whole tensor would otherwise be a single block; on
    single-TC generations two half-size blocks are still well past the
    roofline knee, so this is harmless there.
    """
    if dim > 8 and pl.cdiv(dim, tile) < 2:
        tile = max(_round_up(pl.cdiv(dim, 2), 8), 8)
    return tile


def _pick_lane_width(total: int, max_w: int = 8192):
    """Largest W = 128 * 2^k (<= max_w) that divides `total`, else None."""
    if total % 128 != 0:
        return None
    w = 128
    while w * 2 <= max_w and total % (w * 2) == 0:
        w *= 2
    return w


# ----------------------------------------------------------------------------
# XLA fallback (tiny or lane-hostile shapes)
# ----------------------------------------------------------------------------
def _xla_fallback(x, mode, key, survival_rate, scale):
    if mode == "row":
        keep = jax.random.bernoulli(key, survival_rate, (x.shape[0],))
        noise = (keep.astype(jnp.float32) * jnp.float32(scale)).reshape(
            (x.shape[0],) + (1,) * (x.ndim - 1))
    else:
        keep = jax.random.bernoulli(key, survival_rate, ())
        noise = keep.astype(jnp.float32) * jnp.float32(scale)
    return (x * noise).astype(x.dtype)


# ----------------------------------------------------------------------------
# Wrapper
# ----------------------------------------------------------------------------
def stochastic_depth_pallas(x, p: float, mode: str, key, training: bool = True,
                            *, min_pallas_bytes: int = 1 << 20,
                            max_block_bytes=None):
    """Pallas equivalent of torchvision-style stochastic_depth."""
    if p < 0.0 or p > 1.0:
        raise ValueError(f"drop probability has to be between 0 and 1, but got {p}")
    if mode not in ("batch", "row"):
        raise ValueError(f"mode has to be either 'batch' or 'row', but got {mode}")
    if (not training) or p == 0.0:
        return x

    N = x.shape[0]
    F = int(np.prod(x.shape[1:])) if x.ndim > 1 else 1
    total = N * F
    survival_rate = 1.0 - p
    scale = (1.0 / survival_rate) if survival_rate > 0.0 else 0.0
    itemsize = jnp.dtype(x.dtype).itemsize

    # --- XLA fallback: tiny tensors or lane-hostile geometry ------------------
    small = total * itemsize < min_pallas_bytes
    if mode == "row":
        if small or F < 128:
            # Narrow feature axis would force masked vst.msk partial stores on
            # every block; XLA fuses the broadcast multiply at full bandwidth.
            return _xla_fallback(x, mode, key, survival_rate, scale)
    else:
        lane_w = _pick_lane_width(total)
        if small or lane_w is None:
            return _xla_fallback(x, mode, key, survival_rate, scale)

    # --- Pallas path ----------------------------------------------------------
    vmem_limit = _vmem_limit_bytes()
    # 2x input + 2x output double-buffered blocks; the (tile_n, 1) noise column
    # and compiler scratch are KiB-scale, so /5 leaves ~20% headroom.
    per_buffer = vmem_limit // 5
    if max_block_bytes is not None:
        per_buffer = min(per_buffer, int(max_block_bytes))

    if mode == "row":
        x2 = x.reshape(N, F)
        keep = jax.random.bernoulli(key, survival_rate, (N,))
        # Noise stays f32 (no sublane-packed sub-32-bit column, exact scale);
        # the kernel casts the product back to x.dtype.
        noise = (keep.astype(jnp.float32) * jnp.float32(scale)).reshape(N, 1)

        tile_n, tile_f = _choose_row_tiles(N, F, itemsize, per_buffer)
        if pl.cdiv(N, tile_n) * pl.cdiv(F, tile_f) < 2:
            tile_n = _split_rows_for_megacore(N, tile_n)
        grid = (pl.cdiv(N, tile_n), pl.cdiv(F, tile_f))

        out = pl.pallas_call(
            _sd_row_kernel,
            out_shape=jax.ShapeDtypeStruct((N, F), x.dtype),
            grid_spec=pltpu.PrefetchScalarGridSpec(
                num_scalar_prefetch=0,
                grid=grid,
                in_specs=[
                    pl.BlockSpec((tile_n, tile_f), lambda i, j: (i, j)),
                    pl.BlockSpec((tile_n, 1), lambda i, j: (i, 0)),  # resident
                ],
                out_specs=pl.BlockSpec((tile_n, tile_f), lambda i, j: (i, j)),
            ),
            compiler_params=pltpu.CompilerParams(
                dimension_semantics=("parallel", "parallel"),
                vmem_limit_bytes=vmem_limit,
            ),
            input_output_aliases={0: 0},   # multiply in place on x2
        )(x2, noise)
        return out.reshape(x.shape)

    # mode == "batch": lane-dense slab, static scale, cond to skip dropped read.
    W = lane_w
    R = total // W
    x2 = x.reshape(R, W)

    tile_r = _choose_slab_rows(R, W, itemsize, per_buffer)
    if pl.cdiv(R, tile_r) < 2:
        tile_r = _split_rows_for_megacore(R, tile_r)
    grid = (pl.cdiv(R, tile_r),)

    def _scaled_copy(xx):
        return pl.pallas_call(
            _make_sd_scale_kernel(scale),
            out_shape=jax.ShapeDtypeStruct((R, W), x.dtype),
            grid_spec=pltpu.PrefetchScalarGridSpec(
                num_scalar_prefetch=0,
                grid=grid,
                in_specs=[pl.BlockSpec((tile_r, W), lambda i: (i, 0))],
                out_specs=pl.BlockSpec((tile_r, W), lambda i: (i, 0)),
            ),
            compiler_params=pltpu.CompilerParams(
                dimension_semantics=("parallel",),
                vmem_limit_bytes=vmem_limit,
            ),
            input_output_aliases={0: 0},
        )(xx)

    keep = jax.random.bernoulli(key, survival_rate, ())
    # Dropped batch: skip the HBM read entirely, only write zeros.
    out = lax.cond(keep, _scaled_copy, lambda xx: jnp.zeros_like(xx), x2)
    return out.reshape(x.shape)


class StochasticDepth:
    """JAX/Pallas port of the PyTorch StochasticDepth module."""

    def __init__(self, p: float, mode: str, min_pallas_bytes: int = 1 << 20):
        self.p = p
        self.mode = mode
        self.training = True
        self.min_pallas_bytes = min_pallas_bytes

    def __call__(self, x, key):
        return stochastic_depth_pallas(x, self.p, self.mode, key, self.training,
                                       min_pallas_bytes=self.min_pallas_bytes)

    def __repr__(self):
        return f"{self.__class__.__name__}(p={self.p}, mode={self.mode})"


if __name__ == "__main__":
    key = jax.random.PRNGKey(0)
    k_x, k_row, k_batch = jax.random.split(key, 3)

    # Small NCHW input consistent with a Swin residual-branch tensor.
    N, C, H, W = 2, 4, 16, 16
    x = jax.random.normal(k_x, (N, C, H, W), dtype=jnp.float32)

    # --- mode="row" (force the Pallas path even for this tiny demo tensor) ---
    p_row = 0.5
    survival = 1.0 - p_row
    keep_row = jax.random.bernoulli(k_row, survival, (N,)).astype(x.dtype)
    ref_row = x * (keep_row / survival).reshape(N, 1, 1, 1)

    sd_row = StochasticDepth(p=p_row, mode="row", min_pallas_bytes=0)
    y_row = jax.block_until_ready(sd_row(x, k_row))
    assert jnp.allclose(y_row, ref_row, atol=1e-6), "row-mode mismatch"

    # --- mode="row" with a tiny per-block budget to exercise the tiled grid ---
    y_row_tiled = jax.block_until_ready(
        stochastic_depth_pallas(x, p_row, "row", k_row, True,
                                min_pallas_bytes=0, max_block_bytes=2 * 1024))
    assert jnp.allclose(y_row_tiled, ref_row, atol=1e-6), "tiled row-mode mismatch"

    # --- mode="batch" (lane-dense slab + cond-skipped read on drop) ----------
    p_b = 0.3
    keep_b = jax.random.bernoulli(k_batch, 1.0 - p_b, ()).astype(x.dtype)
    ref_batch = x * (keep_b / (1.0 - p_b))

    sd_batch = StochasticDepth(p=p_b, mode="batch", min_pallas_bytes=0)
    y_batch = jax.block_until_ready(sd_batch(x, k_batch))
    assert jnp.allclose(y_batch, ref_batch, atol=1e-6), "batch-mode mismatch"

    # --- mode="batch" with p=1.0 (always dropped -> zeros branch) ------------
    y_drop = jax.block_until_ready(
        stochastic_depth_pallas(x, 1.0, "batch", k_batch, True,
                                min_pallas_bytes=0))
    assert jnp.allclose(y_drop, jnp.zeros_like(x)), "p=1 batch-mode mismatch"

    # --- eval mode / p == 0 passthrough ---------------------------------------
    sd_eval = StochasticDepth(p=0.5, mode="row", min_pallas_bytes=0)
    sd_eval.training = False
    y_eval = jax.block_until_ready(sd_eval(x, k_row))
    assert jnp.array_equal(y_eval, x), "eval-mode passthrough mismatch"

    print("KERNEL_OK")
</pallas_src>

<mosaic_0001>
module attributes {stable_mosaic.version = 11 : i64} {
  func.func @_sd_row_kernel(%arg0: i32, %arg1: i32, %arg2: memref<2x1024xf32, #tpu.memory_space<vmem>>, %arg3: memref<2x1xf32, #tpu.memory_space<vmem>>, %arg4: memref<2x1024xf32, #tpu.memory_space<vmem>>) attributes {dimension_semantics = [#tpu.dimension_semantics<parallel>, #tpu.dimension_semantics<parallel>], iteration_bounds = array<i64: 1, 1>, scalar_prefetch = 0 : i64, scratch_operands = 0 : i64, tpu.core_type = #tpu.core_type<tc>, window_params = [{transform_indices = @transform_0, window_bounds = array<i64: 2, 1024>}, {transform_indices = @transform_1, window_bounds = array<i64: 2, 1>}, {transform_indices = @transform_2, window_bounds = array<i64: 2, 1024>}]} {
    %c0 = arith.constant 0 : index
    %c0_0 = arith.constant 0 : index
    %0 = vector.load %arg2[%c0, %c0_0] : memref<2x1024xf32, #tpu.memory_space<vmem>>, vector<2x1024xf32>
    %c0_1 = arith.constant 0 : index
    %c0_2 = arith.constant 0 : index
    %1 = vector.load %arg3[%c0_1, %c0_2] : memref<2x1xf32, #tpu.memory_space<vmem>>, vector<2x1xf32>
    %2 = vector.broadcast %1 : vector<2x1xf32> to vector<2x1024xf32>
    %3 = arith.mulf %0, %2 : vector<2x1024xf32>
    %c0_3 = arith.constant 0 : index
    %c0_4 = arith.constant 0 : index
    %4 = vector.load %arg4[%c0_3, %c0_4] : memref<2x1024xf32, #tpu.memory_space<vmem>>, vector<2x1024xf32>
    tpu.vector_store %arg4[%c0_3, %c0_4], %3 {strides = array<i32>} : memref<2x1024xf32, #tpu.memory_space<vmem>>, vector<2x1024xf32>,
    return
  }
  func.func @transform_0(%arg0: i32, %arg1: i32) -> (i32, i32) {
    %c0_i32 = arith.constant 0 : i32
    return %arg0, %arg1 : i32, i32
  }
  func.func @transform_1(%arg0: i32, %arg1: i32) -> (i32, i32) {
    %c0_i32 = arith.constant 0 : i32
    %c0_i32_0 = arith.constant 0 : i32
    return %arg0, %c0_i32 : i32, i32
  }
  func.func @transform_2(%arg0: i32, %arg1: i32) -> (i32, i32) {
    %c0_i32 = arith.constant 0 : i32
    return %arg0, %arg1 : i32, i32
  }
}

</mosaic_0001>

<llo_original>
// kernel: tpu_custom_call.1
$region0: #{tpu_custom_call.1}
  #allocation0 [shape = 'u32[]', space=smem, size = 0x4, offset = 0x4, fixed_abs, tag = 'smem constant byte address 0x4 - core index']
  #allocation1 [shape = 'u32[144,128]{1,0:T(1,128)}', space=vmem, size = 0x12000, scoped, tag = 'internal scratch']
  %s0 = inlined_call_operand.hbm [shape: f32[2,1024], index: 0, kind: input, shape index: {}, may-alias: {0,2}]
  %s1 = inlined_call_operand.vmem [shape: f32[2,1], index: 1, kind: input, shape index: {}]
  %s2 = inlined_call_operand.hbm [shape: f32[2,1024], index: 2, kind: output, shape index: {}, may-alias: {0,2}]
  %s3 = sld [smem:[#allocation0]]
  $region22: #{tpu_custom_call.1} parent=0
    _
  %s5 = ssub.s32 1, %s3
  %s6 = scalar_select 0, %s5, %s3
  $region1: #{tpu_custom_call.1} parent=0
    #allocation2 [shape = 'u8[8192]{0}', space=vmem, size = 0x2000, scoped, tag = 'input window, operand 0, single buffered']
    #allocation3 [shape = 's32[1]{0}', space=sflag, size = 0x4, scoped, tag = 'scoped memory for tpu_custom_call.1']
    #allocation4 [shape = 's32[1]{0}', space=sflag, size = 0x4, scoped, tag = 'scoped memory for tpu_custom_call.1']
    #allocation5 [shape = 'u8[8192]{0}', space=vmem, size = 0x2000, scoped, tag = 'output window, operand 0, single buffered']
    %7 = vsyncpa [#allocation3], 0
    %8 = vsyncpa [#allocation4], 0
    // Predicated region
    $region2: #{tpu_custom_call.1} parent=1 // pred_check
      _
    $region3: #{tpu_custom_call.1} parent=1 // pred_check_branch
      %10 = sbr.rel (0) target = $region5
    $region4: #{tpu_custom_call.1} parent=1 // pred_region
      %s12 = ssub.s32 256, 256
      %13 = vsyncadd [#allocation3], %s12
      %s15 = sshll.u32 [#allocation2], 4
      %s16 = int_to_ptr.vmem [resolvable:$true] %s15
      %18 = dma.hbm_to_vmem [thread:$0]  %s0, 256, %s16, [#allocation3]
    $region5: #{tpu_custom_call.1} parent=1 // pred_fallthru
      _
    // Predicated region
    $region6: #{tpu_custom_call.1} parent=1 // pred_check
      _
    $region7: #{tpu_custom_call.1} parent=1 // pred_check_branch
      %20 = sbr.rel (0) target = $region9
    $region8: #{tpu_custom_call.1} parent=1 // pred_region
      _
    $region9: #{tpu_custom_call.1} parent=1 // pred_fallthru
      _
    // Predicated region
    $region10: #{tpu_custom_call.1} parent=1 // pred_check
      _
    $region11: #{tpu_custom_call.1} parent=1 // pred_check_branch
      %22 = sbr.rel (0) target = $region13
    $region12: #{tpu_custom_call.1} parent=1 // pred_region
      %23 = dma.done [#allocation3], 256
    $region13: #{tpu_custom_call.1} parent=1 // pred_fallthru
      _
    %v24 = vld [vmem:[#allocation2] sm:$0xff]
    %v25 = vld [vmem:[#allocation2 + $0x8] sm:$0xff]
    %v26 = vld [vmem:[%s1] sm:$0x3]
    %28 = vset.pattern.permute.xlu0 0
    %29 = vperm.xlu0 %28, %v26
    %v30 = vpop.permute.xlu0 %29
    %v32 = vunpack.c.l.s4 269488144
    %v33 = vunpack.c.0.s8 %v32
    %v34 = vlaneseq
    %v35 = vshrl.u32 %v34, 7
    %v36 = vsub.s32 %v33, %v35
    %v37 = vrot.slane %v30, %v36
    %v39 = vmul.f32 %v24, %v37
    %v40 = vmul.f32 %v25, %v37
    %41 = vst [vmem:[#allocation5] sm:$0xff] %v39
    %42 = vst [vmem:[#allocation5 + $0x8] sm:$0xff] %v40
    // Predicated region
    $region14: #{tpu_custom_call.1} parent=1 // pred_check
      _
    $region15: #{tpu_custom_call.1} parent=1 // pred_check_branch
      %44 = sbr.rel (0) target = $region17
    $region16: #{tpu_custom_call.1} parent=1 // pred_region
      %s46 = ssub.s32 256, 256
      %47 = vsyncadd [#allocation4], %s46
      %s49 = sshll.u32 [#allocation5], 4
      %s50 = int_to_ptr.vmem [resolvable:$true] %s49
      %52 = dma.vmem_to_hbm [thread:$0]  %s50, 256, %s2, [#allocation4]
    $region17: #{tpu_custom_call.1} parent=1 // pred_fallthru
      _
    // Predicated region
    $region18: #{tpu_custom_call.1} parent=1 // pred_check
      _
    $region19: #{tpu_custom_call.1} parent=1 // pred_check_branch
      %54 = sbr.rel (0) target = $region21
    $region20: #{tpu_custom_call.1} parent=1 // pred_region
      %55 = dma.done [#allocation4], 256
    $region21: #{tpu_custom_call.1} parent=1 // pred_fallthru
      _
    %56 = vsyncpa [#allocation3], 1
    %57 = vsyncpa [#allocation4], 1

</llo_original>
